<compile_context>
chip_gen: v7x
topology: tpu7x:2x2x1
jax: 0.10.0
libtpu: 0.0.40
codegen_flags: <defaults>
</compile_context>

<pallas_src>
import jax
import jax.numpy as jnp
from jax.experimental import pallas as pl
from jax.experimental.pallas import tpu as pltpu

_LANE = 128       # lane width: batch tile is always a multiple of this
_MAX_TB = 8192    # max batch lanes per grid step (~1 MiB of f32 intermediates)


def _round_up(n, m):
    return ((n + m - 1) // m) * m


def _choose_tb(B):
    """Pick the batch tile (in lanes)."""
    if B <= _MAX_TB:
        return max(_LANE, _round_up(B, _LANE))      # single tile
    n_steps = -(-B // _MAX_TB)                      # ceil
    n_steps = _round_up(n_steps, 2)                 # even #steps -> both v7x TCs busy
    return _round_up(-(-B // n_steps), _LANE)


def _mlp_kernel(x_ref,
                w1_ref, b1_ref,
                w2_ref, b2_ref,
                w3_ref, b3_ref,
                w4_ref, b4_ref,
                o_ref):
    """Fused 4-layer MLP on one transposed batch tile.

    x: (2, tb) -> (NN, tb) -> (NN/2, tb) -> (NN/2, tb) -> (1, tb)
    """
    x = x_ref[...]                                            # (2, tb)

    # Layer 1: in=2 — two VPU broadcast-FMAs, skips the MXU entirely.
    h = jnp.tanh(w1_ref[:, 0:1] * x[0:1, :]
                 + w1_ref[:, 1:2] * x[1:2, :]
                 + b1_ref[...])                               # (NN, tb)

    # Layers 2 & 3: MXU matmuls (lane-dense N = tb), f32 acc, tanh on the EUP.
    h = jnp.tanh(jnp.dot(w2_ref[...], h, preferred_element_type=jnp.float32)
                 + b2_ref[...])                               # (NN/2, tb)
    h = jnp.tanh(jnp.dot(w3_ref[...], h, preferred_element_type=jnp.float32)
                 + b3_ref[...])                               # (NN/2, tb)

    # Output layer: out=1 — weighted sublane reduce (XLU) instead of a padded
    # matmul; produces a lane-dense (1, tb) row.
    out = jnp.sum(w4_ref[...] * h, axis=0, keepdims=True) + b4_ref[...]
    o_ref[...] = out.astype(o_ref.dtype)                      # (1, tb)


def net_forward(x, params, *, tb=None):
    """x: (B, 2) float32.  params: (out, in) weights and (out, 1) biases.

    Returns (B, 1) float32, matching the PyTorch Net forward pass.
    """
    B, Din = x.shape
    assert Din == 2

    w1, b1 = params["w1"], params["b1"]      # (NN, 2),   (NN, 1)
    w2, b2 = params["w2"], params["b2"]      # (NN/2, NN),(NN/2, 1)
    w3, b3 = params["w3"], params["b3"]      # (NN/2,NN/2),(NN/2,1)
    w4, b4 = params["w4"], params["b4"]      # (NN/2, 1), (1, 1)

    if tb is None:
        tb = _choose_tb(B)
    tb = max(_LANE, _round_up(tb, _LANE))

    # Transpose to batch-on-lanes layout and pad the (tiny, 2-row) input along
    # lanes to a tile multiple.
    Bp = _round_up(B, tb)
    xT = x.T                                                  # (2, B)
    if Bp != B:
        xT = jnp.pad(xT, ((0, 0), (0, Bp - B)))

    grid = (Bp // tb,)

    def bcast(shape):
        # Same full block every grid step; Pallas skips re-DMA of unchanged blocks.
        return pl.BlockSpec(shape, lambda i: (0, 0))

    out_full = pl.pallas_call(
        _mlp_kernel,
        out_shape=jax.ShapeDtypeStruct((1, Bp), jnp.float32),
        grid_spec=pltpu.PrefetchScalarGridSpec(
            num_scalar_prefetch=0,
            grid=grid,
            in_specs=[
                pl.BlockSpec((2, tb), lambda i: (0, i)),      # x^T tile over batch
                bcast(w1.shape), bcast(b1.shape),
                bcast(w2.shape), bcast(b2.shape),
                bcast(w3.shape), bcast(b3.shape),
                bcast(w4.shape), bcast(b4.shape),
            ],
            out_specs=pl.BlockSpec((1, tb), lambda i: (0, i)),
        ),
        compiler_params=pltpu.CompilerParams(
            dimension_semantics=("parallel",)),
    )(xT, w1, b1, w2, b2, w3, b3, w4, b4)

    # Strip lane padding and return (B, 1).
    return out_full[0, :B].reshape(B, 1)


def init_params(key, NN):
    """Deterministic init mimicking nn.Linear defaults, stored (out, in) / (out, 1)."""
    h = NN // 2
    dims = [  # (shape, fan_in)
        ((NN, 2), 2), ((NN, 1), 2),
        ((h, NN), NN), ((h, 1), NN),
        ((h, h), h), ((h, 1), h),
        ((h, 1), h), ((1, 1), h),      # w4 stored as a column (= PyTorch W4.T)
    ]
    names = ["w1", "b1", "w2", "b2", "w3", "b3", "w4", "b4"]
    keys = jax.random.split(key, len(dims))
    params = {}
    for name, k, (shape, fan_in) in zip(names, keys, dims):
        bound = 1.0 / jnp.sqrt(jnp.asarray(fan_in, jnp.float32))
        params[name] = jax.random.uniform(k, shape, jnp.float32,
                                          minval=-bound, maxval=bound)
    return params


def net_forward_ref(x, params):
    """Pure-JAX reference for correctness checking."""
    h = jnp.tanh(x @ params["w1"].T + params["b1"].T)
    h = jnp.tanh(h @ params["w2"].T + params["b2"].T)
    h = jnp.tanh(h @ params["w3"].T + params["b3"].T)
    return h @ params["w4"] + params["b4"]                    # (B, 1)


if __name__ == "__main__":
    NN = 32          # hidden width (Net(NN)); hidden1/2 width = NN // 2 = 16

    key = jax.random.PRNGKey(0)
    k_x, k_p = jax.random.split(key)
    params = init_params(k_p, NN)

    # --- small check: batch of 8 (x, t) collocation points ---------------------
    B = 8
    x_small = jax.random.uniform(k_x, (B, 2), jnp.float32)
    out = jax.block_until_ready(net_forward(x_small, params))
    ref = net_forward_ref(x_small, params)
    assert out.shape == (B, 1)
    assert jnp.allclose(out, ref, atol=1e-5, rtol=1e-5), "mismatch vs reference (small)"

    # --- medium check: exercises lane padding within a single tile -------------
    B2 = 1000
    x_med = jax.random.uniform(jax.random.PRNGKey(1), (B2, 2), jnp.float32)
    out2 = jax.block_until_ready(net_forward(x_med, params))
    ref2 = net_forward_ref(x_med, params)
    assert out2.shape == (B2, 1)
    assert jnp.allclose(out2, ref2, atol=1e-5, rtol=1e-5), "mismatch vs reference (med)"

    # --- larger check: multi-step (even) parallel grid + padding ---------------
    B3 = 10000
    x_big = jax.random.uniform(jax.random.PRNGKey(2), (B3, 2), jnp.float32)
    out3 = jax.block_until_ready(net_forward(x_big, params))
    ref3 = net_forward_ref(x_big, params)
    assert out3.shape == (B3, 1)
    assert jnp.allclose(out3, ref3, atol=1e-5, rtol=1e-5), "mismatch vs reference (big)"

    print("KERNEL_OK")
</pallas_src>

<mosaic_0001>
module attributes {stable_mosaic.version = 11 : i64} {
  func.func @_mlp_kernel(%arg0: i32, %arg1: memref<2x128xf32, #tpu.memory_space<vmem>>, %arg2: memref<32x2xf32, #tpu.memory_space<vmem>>, %arg3: memref<32x1xf32, #tpu.memory_space<vmem>>, %arg4: memref<16x32xf32, #tpu.memory_space<vmem>>, %arg5: memref<16x1xf32, #tpu.memory_space<vmem>>, %arg6: memref<16x16xf32, #tpu.memory_space<vmem>>, %arg7: memref<16x1xf32, #tpu.memory_space<vmem>>, %arg8: memref<16x1xf32, #tpu.memory_space<vmem>>, %arg9: memref<1x1xf32, #tpu.memory_space<vmem>>, %arg10: memref<1x128xf32, #tpu.memory_space<vmem>>) attributes {dimension_semantics = [#tpu.dimension_semantics<parallel>], iteration_bounds = array<i64: 1>, scalar_prefetch = 0 : i64, scratch_operands = 0 : i64, tpu.core_type = #tpu.core_type<tc>, window_params = [{transform_indices = @transform_0, window_bounds = array<i64: 2, 128>}, {pipeline_mode = #tpu.pipeline_mode<synchronous>, transform_indices = @transform_1, window_bounds = array<i64: 32, 2>}, {pipeline_mode = #tpu.pipeline_mode<synchronous>, transform_indices = @transform_2, window_bounds = array<i64: 32, 1>}, {pipeline_mode = #tpu.pipeline_mode<synchronous>, transform_indices = @transform_3, window_bounds = array<i64: 16, 32>}, {pipeline_mode = #tpu.pipeline_mode<synchronous>, transform_indices = @transform_4, window_bounds = array<i64: 16, 1>}, {pipeline_mode = #tpu.pipeline_mode<synchronous>, transform_indices = @transform_5, window_bounds = array<i64: 16, 16>}, {pipeline_mode = #tpu.pipeline_mode<synchronous>, transform_indices = @transform_6, window_bounds = array<i64: 16, 1>}, {pipeline_mode = #tpu.pipeline_mode<synchronous>, transform_indices = @transform_7, window_bounds = array<i64: 16, 1>}, {pipeline_mode = #tpu.pipeline_mode<synchronous>, transform_indices = @transform_8, window_bounds = array<i64: 1, 1>}, {transform_indices = @transform_9, window_bounds = array<i64: 1, 128>}]} {
    %c0 = arith.constant 0 : index
    %c0_0 = arith.constant 0 : index
    %0 = vector.load %arg1[%c0, %c0_0] : memref<2x128xf32, #tpu.memory_space<vmem>>, vector<2x128xf32>
    %c0_1 = arith.constant 0 : index
    %c0_2 = arith.constant 0 : index
    %1 = vector.load %arg2[%c0_1, %c0_2] : memref<32x2xf32, #tpu.memory_space<vmem>>, vector<32x1xf32>
    %2 = vector.extract_strided_slice %0 {offsets = [0, 0], sizes = [1, 128], strides = [1, 1]} : vector<2x128xf32> to vector<1x128xf32>
    %3 = vector.broadcast %1 : vector<32x1xf32> to vector<32x128xf32>
    %4 = vector.broadcast %2 : vector<1x128xf32> to vector<32x128xf32>
    %5 = arith.mulf %3, %4 : vector<32x128xf32>
    %c0_3 = arith.constant 0 : index
    %c1 = arith.constant 1 : index
    %6 = vector.load %arg2[%c0_3, %c1] : memref<32x2xf32, #tpu.memory_space<vmem>>, vector<32x1xf32>
    %7 = vector.extract_strided_slice %0 {offsets = [1, 0], sizes = [1, 128], strides = [1, 1]} : vector<2x128xf32> to vector<1x128xf32>
    %8 = vector.broadcast %6 : vector<32x1xf32> to vector<32x128xf32>
    %9 = vector.broadcast %7 : vector<1x128xf32> to vector<32x128xf32>
    %10 = arith.mulf %8, %9 : vector<32x128xf32>
    %11 = arith.addf %5, %10 : vector<32x128xf32>
    %c0_4 = arith.constant 0 : index
    %c0_5 = arith.constant 0 : index
    %12 = vector.load %arg3[%c0_4, %c0_5] : memref<32x1xf32, #tpu.memory_space<vmem>>, vector<32x1xf32>
    %13 = vector.broadcast %12 : vector<32x1xf32> to vector<32x128xf32>
    %14 = arith.addf %11, %13 : vector<32x128xf32>
    %15 = math.tanh %14 : vector<32x128xf32>
    %c0_6 = arith.constant 0 : index
    %c0_7 = arith.constant 0 : index
    %16 = vector.load %arg4[%c0_6, %c0_7] : memref<16x32xf32, #tpu.memory_space<vmem>>, vector<16x32xf32>
    %cst = arith.constant dense<0.000000e+00> : vector<16x128xf32>
    %17 = tpu.matmul %16, %15, %cst {dimension_numbers = #tpu.dot_dimension_numbers<[1], [0], [0], [1], [0, 0, 1, 1], [], []>} : vector<16x32xf32>, vector<32x128xf32>, vector<16x128xf32> -> vector<16x128xf32>
    %c0_8 = arith.constant 0 : index
    %c0_9 = arith.constant 0 : index
    %18 = vector.load %arg5[%c0_8, %c0_9] : memref<16x1xf32, #tpu.memory_space<vmem>>, vector<16x1xf32>
    %19 = vector.broadcast %18 : vector<16x1xf32> to vector<16x128xf32>
    %20 = arith.addf %17, %19 : vector<16x128xf32>
    %21 = math.tanh %20 : vector<16x128xf32>
    %c0_10 = arith.constant 0 : index
    %c0_11 = arith.constant 0 : index
    %22 = vector.load %arg6[%c0_10, %c0_11] : memref<16x16xf32, #tpu.memory_space<vmem>>, vector<16x16xf32>
    %cst_12 = arith.constant dense<0.000000e+00> : vector<16x128xf32>
    %23 = tpu.matmul %22, %21, %cst_12 {dimension_numbers = #tpu.dot_dimension_numbers<[1], [0], [0], [1], [0, 0, 1, 1], [], []>} : vector<16x16xf32>, vector<16x128xf32>, vector<16x128xf32> -> vector<16x128xf32>
    %c0_13 = arith.constant 0 : index
    %c0_14 = arith.constant 0 : index
    %24 = vector.load %arg7[%c0_13, %c0_14] : memref<16x1xf32, #tpu.memory_space<vmem>>, vector<16x1xf32>
    %25 = vector.broadcast %24 : vector<16x1xf32> to vector<16x128xf32>
    %26 = arith.addf %23, %25 : vector<16x128xf32>
    %27 = math.tanh %26 : vector<16x128xf32>
    %c0_15 = arith.constant 0 : index
    %c0_16 = arith.constant 0 : index
    %28 = vector.load %arg8[%c0_15, %c0_16] : memref<16x1xf32, #tpu.memory_space<vmem>>, vector<16x1xf32>
    %29 = vector.broadcast %28 : vector<16x1xf32> to vector<16x128xf32>
    %30 = arith.mulf %29, %27 : vector<16x128xf32>
    %cst_17 = arith.constant dense<0.000000e+00> : vector<128xf32>
    %31 = vector.multi_reduction <add>, %30, %cst_17 [0] : vector<16x128xf32> to vector<128xf32>
    %32 = vector.shape_cast %31 : vector<128xf32> to vector<1x128xf32>
    %c0_18 = arith.constant 0 : index
    %c0_19 = arith.constant 0 : index
    %33 = vector.load %arg9[%c0_18, %c0_19] : memref<1x1xf32, #tpu.memory_space<vmem>>, vector<1x1xf32>
    %34 = vector.broadcast %33 : vector<1x1xf32> to vector<1x128xf32>
    %35 = arith.addf %32, %34 : vector<1x128xf32>
    %c0_20 = arith.constant 0 : index
    %c0_21 = arith.constant 0 : index
    %36 = vector.load %arg10[%c0_20, %c0_21] : memref<1x128xf32, #tpu.memory_space<vmem>>, vector<1x128xf32>
    tpu.vector_store %arg10[%c0_20, %c0_21], %35 {strides = array<i32>} : memref<1x128xf32, #tpu.memory_space<vmem>>, vector<1x128xf32>,
    return
  }
  func.func @transform_0(%arg0: i32) -> (i32, i32) {
    %c0_i32 = arith.constant 0 : i32
    %c0_i32_0 = arith.constant 0 : i32
    return %c0_i32, %arg0 : i32, i32
  }
  func.func @transform_1(%arg0: i32) -> (i32, i32) {
    %c0_i32 = arith.constant 0 : i32
    %c0_i32_0 = arith.constant 0 : i32
    %c0_i32_1 = arith.constant 0 : i32
    return %c0_i32, %c0_i32_0 : i32, i32
  }
  func.func @transform_2(%arg0: i32) -> (i32, i32) {
    %c0_i32 = arith.constant 0 : i32
    %c0_i32_0 = arith.constant 0 : i32
    %c0_i32_1 = arith.constant 0 : i32
    return %c0_i32, %c0_i32_0 : i32, i32
  }
  func.func @transform_3(%arg0: i32) -> (i32, i32) {
    %c0_i32 = arith.constant 0 : i32
    %c0_i32_0 = arith.constant 0 : i32
    %c0_i32_1 = arith.constant 0 : i32
    return %c0_i32, %c0_i32_0 : i32, i32
  }
  func.func @transform_4(%arg0: i32) -> (i32, i32) {
    %c0_i32 = arith.constant 0 : i32
    %c0_i32_0 = arith.constant 0 : i32
    %c0_i32_1 = arith.constant 0 : i32
    return %c0_i32, %c0_i32_0 : i32, i32
  }
  func.func @transform_5(%arg0: i32) -> (i32, i32) {
    %c0_i32 = arith.constant 0 : i32
    %c0_i32_0 = arith.constant 0 : i32
    %c0_i32_1 = arith.constant 0 : i32
    return %c0_i32, %c0_i32_0 : i32, i32
  }
  func.func @transform_6(%arg0: i32) -> (i32, i32) {
    %c0_i32 = arith.constant 0 : i32
    %c0_i32_0 = arith.constant 0 : i32
    %c0_i32_1 = arith.constant 0 : i32
    return %c0_i32, %c0_i32_0 : i32, i32
  }
  func.func @transform_7(%arg0: i32) -> (i32, i32) {
    %c0_i32 = arith.constant 0 : i32
    %c0_i32_0 = arith.constant 0 : i32
    %c0_i32_1 = arith.constant 0 : i32
    return %c0_i32, %c0_i32_0 : i32, i32
  }
  func.func @transform_8(%arg0: i32) -> (i32, i32) {
    %c0_i32 = arith.constant 0 : i32
    %c0_i32_0 = arith.constant 0 : i32
    %c0_i32_1 = arith.constant 0 : i32
    return %c0_i32, %c0_i32_0 : i32, i32
  }
  func.func @transform_9(%arg0: i32) -> (i32, i32) {
    %c0_i32 = arith.constant 0 : i32
    %c0_i32_0 = arith.constant 0 : i32
    return %c0_i32, %arg0 : i32, i32
  }
}

</mosaic_0001>

<llo_original>
// kernel: tpu_custom_call.1
$region0: #{tpu_custom_call.1}
  #allocation0 [shape = 'u32[]', space=smem, size = 0x4, offset = 0x4, fixed_abs, tag = 'smem constant byte address 0x4 - core index']
  #allocation1 [shape = 'u32[144,128]{1,0:T(1,128)}', space=vmem, size = 0x12000, scoped, tag = 'internal scratch']
  #allocation2 [shape = 'f32[1,1]{1,0:T(1,128)S(1)}', space=vmem, size = 0x200, scoped, tag = 'scoped memory for tpu_custom_call.1']
  %s0 = inlined_call_operand.vmem [shape: f32[2,128], index: 0, kind: input, shape index: {}]
  %s1 = inlined_call_operand.vmem [shape: f32[32,2], index: 1, kind: input, shape index: {}]
  %s2 = inlined_call_operand.vmem [shape: f32[32,1], index: 2, kind: input, shape index: {}]
  %s3 = inlined_call_operand.vmem [shape: f32[16,32], index: 3, kind: input, shape index: {}]
  %s4 = inlined_call_operand.vmem [shape: f32[16,1], index: 4, kind: input, shape index: {}]
  %s5 = inlined_call_operand.vmem [shape: f32[16,16], index: 5, kind: input, shape index: {}]
  %s6 = inlined_call_operand.vmem [shape: f32[16,1], index: 6, kind: input, shape index: {}]
  %s7 = inlined_call_operand.vmem [shape: f32[16,1], index: 7, kind: input, shape index: {}]
  %s8 = inlined_call_operand.<no memory space> [shape: f32[1,1], index: 8, kind: input, shape index: {}]
  %s9 = inlined_call_operand.hbm [shape: f32[1,128], index: 9, kind: output, shape index: {}]
  %s10 = sld [smem:[#allocation0]]
  $region46: #{tpu_custom_call.1} parent=0
    _
  %s12 = ssub.s32 1, %s10
  %s13 = scalar_select 0, %s12, %s10
  %v14 = vstv %s8
  %15 = vst [vmem:[#allocation2] sm:$0x1] %v14
  $region1: #{tpu_custom_call.1} parent=0
    #allocation3 [shape = 'u8[512]{0}', space=vmem, size = 0x400, scoped, tag = 'output window, operand 0, single buffered']
    #allocation4 [shape = 's32[1]{0}', space=sflag, size = 0x4, scoped, tag = 'scoped memory for tpu_custom_call.1']
    %16 = vsyncpa [#allocation4], 0
    // Predicated region
    $region2: #{tpu_custom_call.1} parent=1 // pred_check
      _
    $region3: #{tpu_custom_call.1} parent=1 // pred_check_branch
      %18 = sbr.rel (0) target = $region5
    $region4: #{tpu_custom_call.1} parent=1 // pred_region
      _
    $region5: #{tpu_custom_call.1} parent=1 // pred_fallthru
      _
    // Predicated region
    $region6: #{tpu_custom_call.1} parent=1 // pred_check
      _
    $region7: #{tpu_custom_call.1} parent=1 // pred_check_branch
      %20 = sbr.rel (0) target = $region9
    $region8: #{tpu_custom_call.1} parent=1 // pred_region
      _
    $region9: #{tpu_custom_call.1} parent=1 // pred_fallthru
      _
    // Predicated region
    $region10: #{tpu_custom_call.1} parent=1 // pred_check
      _
    $region11: #{tpu_custom_call.1} parent=1 // pred_check_branch
      %22 = sbr.rel (0) target = $region13
    $region12: #{tpu_custom_call.1} parent=1 // pred_region
      _
    $region13: #{tpu_custom_call.1} parent=1 // pred_fallthru
      _
    // Predicated region
    $region14: #{tpu_custom_call.1} parent=1 // pred_check
      _
    $region15: #{tpu_custom_call.1} parent=1 // pred_check_branch
      %24 = sbr.rel (0) target = $region17
    $region16: #{tpu_custom_call.1} parent=1 // pred_region
      _
    $region17: #{tpu_custom_call.1} parent=1 // pred_fallthru
      _
    // Predicated region
    $region18: #{tpu_custom_call.1} parent=1 // pred_check
      _
    $region19: #{tpu_custom_call.1} parent=1 // pred_check_branch
      %26 = sbr.rel (0) target = $region21
    $region20: #{tpu_custom_call.1} parent=1 // pred_region
      _
    $region21: #{tpu_custom_call.1} parent=1 // pred_fallthru
      _
    // Predicated region
    $region22: #{tpu_custom_call.1} parent=1 // pred_check
      _
    $region23: #{tpu_custom_call.1} parent=1 // pred_check_branch
      %28 = sbr.rel (0) target = $region25
    $region24: #{tpu_custom_call.1} parent=1 // pred_region
      _
    $region25: #{tpu_custom_call.1} parent=1 // pred_fallthru
      _
    // Predicated region
    $region26: #{tpu_custom_call.1} parent=1 // pred_check
      _
    $region27: #{tpu_custom_call.1} parent=1 // pred_check_branch
      %30 = sbr.rel (0) target = $region29
    $region28: #{tpu_custom_call.1} parent=1 // pred_region
      _
    $region29: #{tpu_custom_call.1} parent=1 // pred_fallthru
      _
    // Predicated region
    $region30: #{tpu_custom_call.1} parent=1 // pred_check
      _
    $region31: #{tpu_custom_call.1} parent=1 // pred_check_branch
      %32 = sbr.rel (0) target = $region33
    $region32: #{tpu_custom_call.1} parent=1 // pred_region
      _
    $region33: #{tpu_custom_call.1} parent=1 // pred_fallthru
      _
    // Predicated region
    $region34: #{tpu_custom_call.1} parent=1 // pred_check
      _
    $region35: #{tpu_custom_call.1} parent=1 // pred_check_branch
      %34 = sbr.rel (0) target = $region37
    $region36: #{tpu_custom_call.1} parent=1 // pred_region
      _
    $region37: #{tpu_custom_call.1} parent=1 // pred_fallthru
      _
    %v35 = vld [vmem:[%s0] sm:$0x3]
    %v36 = vld [vmem:[%s1] sm:$0xff]
    %v37 = vld [vmem:[%s1 + $0x8] sm:$0xff]
    %v38 = vld [vmem:[%s1 + $0x10] sm:$0xff]
    %v39 = vld [vmem:[%s1 + $0x18] sm:$0xff]
    %41 = vset.pattern.permute.xlu0 0
    %42 = vperm.xlu0 %41, %v36
    %v43 = vpop.permute.xlu0 %42
    %46 = vset.pattern.permute.xlu0 0
    %47 = vperm.xlu0 %46, %v37
    %v48 = vpop.permute.xlu0 %47
    %51 = vset.pattern.permute.xlu0 0
    %52 = vperm.xlu0 %51, %v38
    %v53 = vpop.permute.xlu0 %52
    %56 = vset.pattern.permute.xlu0 0
    %57 = vperm.xlu0 %56, %v39
    %v58 = vpop.permute.xlu0 %57
    %v60 = vlaneseq
    %v61 = vshrl.u32 %v60, 7
    %v62 = vsub.s32 0, %v61
    %v63 = vrot.slane %v35, %v62
    %v64 = vmul.f32 %v43, %v63
    %v65 = vmul.f32 %v48, %v63
    %v66 = vmul.f32 %v53, %v63
    %v67 = vmul.f32 %v58, %v63
    %68 = vset.pattern.permute.xlu0 1
    %69 = vperm.xlu0 %68, %v36
    %v70 = vpop.permute.xlu0 %69
    %72 = vset.pattern.permute.xlu0 1
    %73 = vperm.xlu0 %72, %v37
    %v74 = vpop.permute.xlu0 %73
    %76 = vset.pattern.permute.xlu0 1
    %77 = vperm.xlu0 %76, %v38
    %v78 = vpop.permute.xlu0 %77
    %80 = vset.pattern.permute.xlu0 1
    %81 = vperm.xlu0 %80, %v39
    %v82 = vpop.permute.xlu0 %81
    %v84 = vlaneseq
    %v85 = vshrl.u32 %v84, 7
    %v86 = vsub.s32 1, %v85
    %v87 = vrot.slane %v35, %v86
    %v88 = vmul.f32 %v70, %v87
    %v89 = vmul.f32 %v74, %v87
    %v90 = vmul.f32 %v78, %v87
    %v91 = vmul.f32 %v82, %v87
    %v92 = vadd.f32 %v64, %v88
    %v93 = vadd.f32 %v65, %v89
    %v94 = vadd.f32 %v66, %v90
    %v95 = vadd.f32 %v67, %v91
    %v96 = vld [vmem:[%s2] sm:$0xff]
    %v97 = vld [vmem:[%s2 + $0x8] sm:$0xff]
    %v98 = vld [vmem:[%s2 + $0x10] sm:$0xff]
    %v99 = vld [vmem:[%s2 + $0x18] sm:$0xff]
    %101 = vset.pattern.permute.xlu0 0
    %102 = vperm.xlu0 %101, %v96
    %v103 = vpop.permute.xlu0 %102
    %106 = vset.pattern.permute.xlu0 0
    %107 = vperm.xlu0 %106, %v97
    %v108 = vpop.permute.xlu0 %107
    %111 = vset.pattern.permute.xlu0 0
    %112 = vperm.xlu0 %111, %v98
    %v113 = vpop.permute.xlu0 %112
    %116 = vset.pattern.permute.xlu0 0
    %117 = vperm.xlu0 %116, %v99
    %v118 = vpop.permute.xlu0 %117
    %v120 = vadd.f32 %v92, %v103
    %v121 = vadd.f32 %v93, %v108
    %v122 = vadd.f32 %v94, %v113
    %v123 = vadd.f32 %v95, %v118
    %v124 = vtanh.pop %v120
    %v125 = vtanh.pop %v121
    %v126 = vtanh.pop %v122
    %v127 = vtanh.pop %v123
    %v128 = vld [vmem:[%s3] sm:$0xff]
    %v129 = vld [vmem:[%s3 + $0x8] sm:$0xff]
    %v130 = vld [vmem:[%s4] sm:$0xff]
    %v131 = vld [vmem:[%s4 + $0x8] sm:$0xff]
    %133 = vset.pattern.permute.xlu0 0
    %134 = vperm.xlu0 %133, %v130
    %v135 = vpop.permute.xlu0 %134
    %138 = vset.pattern.permute.xlu0 0
    %139 = vperm.xlu0 %138, %v131
    %v140 = vpop.permute.xlu0 %139
    %vm142 = vcmask 261120
    %v144 = vsel %vm142, %v128, 0
    %v147 = vsel %vm142, %v129, 0
    %149 = vmatprep.subr.mxu0 0.0
    %150 = vmatpush1.msra.mxu0 %v124
    %151 = vmatprep.subr.mxu0 0.0
    %152 = vmatpush1.msra.mxu0 %v125
    %153 = vmatprep.subr.mxu0 0.0
    %154 = vmatpush1.msra.mxu0 %v126
    %155 = vmatprep.subr.mxu0 0.0
    %156 = vmatpush1.msra.mxu0 %v127
    %157 = vmatprep.subr.mxu0 0.0
    %158 = vmatpush1.msra.mxu0 0.0
    %159 = vmatprep.subr.mxu0 0.0
    %160 = vmatpush1.msra.mxu0 0.0
    %161 = vmatprep.subr.mxu0 0.0
    %162 = vmatpush1.msra.mxu0 0.0
    %163 = vmatprep.subr.mxu0 0.0
    %164 = vmatpush1.msra.mxu0 0.0
    %165 = vmatprep.subr.mxu0 0.0
    %166 = vmatpush1.msra.mxu0 0.0
    %167 = vmatprep.subr.mxu0 0.0
    %168 = vmatpush1.msra.mxu0 0.0
    %169 = vmatprep.subr.mxu0 0.0
    %170 = vmatpush1.msra.mxu0 0.0
    %171 = vmatprep.subr.mxu0 0.0
    %172 = vmatpush1.msra.mxu0 0.0
    %173 = vmatprep.subr.mxu0 0.0
    %174 = vmatpush1.msra.mxu0 0.0
    %175 = vmatprep.subr.mxu0 0.0
    %176 = vmatpush1.msra.mxu0 0.0
    %177 = vmatprep.subr.mxu0 0.0
    %178 = vmatpush1.msra.mxu0 0.0
    %179 = vmatprep.subr.mxu0 0.0
    %180 = vmatpush1.msra.mxu0 0.0
    %181 = vmatprep.subr.mxu0 0.0
    %182 = vmatpush1.msra.mxu0 0.0
    %183 = vmatprep.subr.mxu0 0.0
    %184 = vmatpush1.msra.mxu0 0.0
    %185 = vmatprep.subr.mxu0 0.0
    %186 = vmatpush1.msra.mxu0 0.0
    %187 = vmatprep.subr.mxu0 0.0
    %188 = vmatpush1.msra.mxu0 0.0
    %189 = vmatprep.subr.mxu0 0.0
    %190 = vmatpush1.msra.mxu0 0.0
    %191 = vmatprep.subr.mxu0 0.0
    %192 = vmatpush1.msra.mxu0 0.0
    %193 = vmatprep.subr.mxu0 0.0
    %194 = vmatpush1.msra.mxu0 0.0
    %195 = vmatprep.subr.mxu0 0.0
    %196 = vmatpush1.msra.mxu0 0.0
    %197 = vmatprep.subr.mxu0 0.0
    %198 = vmatpush1.msra.mxu0 0.0
    %199 = vmatprep.subr.mxu0 0.0
    %200 = vmatpush1.msra.mxu0 0.0
    %201 = vmatprep.subr.mxu0 0.0
    %202 = vmatpush1.msra.mxu0 0.0
    %203 = vmatprep.subr.mxu0 0.0
    %204 = vmatpush1.msra.mxu0 0.0
    %205 = vmatprep.subr.mxu0 0.0
    %206 = vmatpush1.msra.mxu0 0.0
    %207 = vmatprep.subr.mxu0 0.0
    %208 = vmatpush1.msra.mxu0 0.0
    %209 = vmatprep.subr.mxu0 0.0
    %210 = vmatpush1.msra.mxu0 0.0
    %211 = vmatprep.subr.mxu0 0.0
    %212 = vmatpush1.msra.mxu0 0.0
    %213 = vmatprep.mubr.f32.mxu0 0.0
    %214 = vmatmul.mubr.f32.gmra.mrb[0].mxu0 %v144
    %v215 = vpop.f32.mrb[0].mxu0
    %v216 = vadd.f32 %v135, %v215
    %v217 = vpop.f32.mrb[0].mxu0
    %218 = vmatprep.mubr.f32.mxu0 0.0
    %219 = vmatmul.mubr.f32.gmra.mrb[0].mxu0 %v147
    %v220 = vpop.f32.mrb[0].mxu0
    %v221 = vadd.f32 %v140, %v220
    %v222 = vpop.f32.mrb[0].mxu0
    %223 = vdwg.mxu0
    %v224 = vtanh.pop %v216
    %v225 = vtanh.pop %v221
    %v226 = vld [vmem:[%s5] sm:$0xff]
    %v227 = vld [vmem:[%s5 + $0x8] sm:$0xff]
    %v228 = vld [vmem:[%s6] sm:$0xff]
    %v229 = vld [vmem:[%s6 + $0x8] sm:$0xff]
    %231 = vset.pattern.permute.xlu0 0
    %232 = vperm.xlu0 %231, %v228
    %v233 = vpop.permute.xlu0 %232
    %236 = vset.pattern.permute.xlu0 0
    %237 = vperm.xlu0 %236, %v229
    %v238 = vpop.permute.xlu0 %237
    %vm240 = vcmask 130048
    %v242 = vsel %vm240, %v226, 0
    %v245 = vsel %vm240, %v227, 0
    %247 = vmatprep.subr.mxu0 0.0
    %248 = vmatpush1.msra.mxu0 %v224
    %249 = vmatprep.subr.mxu0 0.0
    %250 = vmatpush1.msra.mxu0 %v225
    %251 = vmatprep.subr.mxu0 0.0
    %252 = vmatpush1.msra.mxu0 0.0
    %253 = vmatprep.subr.mxu0 0.0
    %254 = vmatpush1.msra.mxu0 0.0
    %255 = vmatprep.subr.mxu0 0.0
    %256 = vmatpush1.msra.mxu0 0.0
    %257 = vmatprep.subr.mxu0 0.0
    %258 = vmatpush1.msra.mxu0 0.0
    %259 = vmatprep.subr.mxu0 0.0
    %260 = vmatpush1.msra.mxu0 0.0
    %261 = vmatprep.subr.mxu0 0.0
    %262 = vmatpush1.msra.mxu0 0.0
    %263 = vmatprep.subr.mxu0 0.0
    %264 = vmatpush1.msra.mxu0 0.0
    %265 = vmatprep.subr.mxu0 0.0
    %266 = vmatpush1.msra.mxu0 0.0
    %267 = vmatprep.subr.mxu0 0.0
    %268 = vmatpush1.msra.mxu0 0.0
    %269 = vmatprep.subr.mxu0 0.0
    %270 = vmatpush1.msra.mxu0 0.0
    %271 = vmatprep.subr.mxu0 0.0
    %272 = vmatpush1.msra.mxu0 0.0
    %273 = vmatprep.subr.mxu0 0.0
    %274 = vmatpush1.msra.mxu0 0.0
    %275 = vmatprep.subr.mxu0 0.0
    %276 = vmatpush1.msra.mxu0 0.0
    %277 = vmatprep.subr.mxu0 0.0
    %278 = vmatpush1.msra.mxu0 0.0
    %279 = vmatprep.subr.mxu0 0.0
    %280 = vmatpush1.msra.mxu0 0.0
    %281 = vmatprep.subr.mxu0 0.0
    %282 = vmatpush1.msra.mxu0 0.0
    %283 = vmatprep.subr.mxu0 0.0
    %284 = vmatpush1.msra.mxu0 0.0
    %285 = vmatprep.subr.mxu0 0.0
    %286 = vmatpush1.msra.mxu0 0.0
    %287 = vmatprep.subr.mxu0 0.0
    %288 = vmatpush1.msra.mxu0 0.0
    %289 = vmatprep.subr.mxu0 0.0
    %290 = vmatpush1.msra.mxu0 0.0
    %291 = vmatprep.subr.mxu0 0.0
    %292 = vmatpush1.msra.mxu0 0.0
    %293 = vmatprep.subr.mxu0 0.0
    %294 = vmatpush1.msra.mxu0 0.0
    %295 = vmatprep.subr.mxu0 0.0
    %296 = vmatpush1.msra.mxu0 0.0
    %297 = vmatprep.subr.mxu0 0.0
    %298 = vmatpush1.msra.mxu0 0.0
    %299 = vmatprep.subr.mxu0 0.0
    %300 = vmatpush1.msra.mxu0 0.0
    %301 = vmatprep.subr.mxu0 0.0
    %302 = vmatpush1.msra.mxu0 0.0
    %303 = vmatprep.subr.mxu0 0.0
    %304 = vmatpush1.msra.mxu0 0.0
    %305 = vmatprep.subr.mxu0 0.0
    %306 = vmatpush1.msra.mxu0 0.0
    %307 = vmatprep.subr.mxu0 0.0
    %308 = vmatpush1.msra.mxu0 0.0
    %309 = vmatprep.subr.mxu0 0.0
    %310 = vmatpush1.msra.mxu0 0.0
    %311 = vmatprep.mubr.f32.mxu0 0.0
    %312 = vmatmul.mubr.f32.gmra.mrb[0].mxu0 %v242
    %v313 = vpop.f32.mrb[0].mxu0
    %v314 = vadd.f32 %v233, %v313
    %v315 = vpop.f32.mrb[0].mxu0
    %316 = vmatprep.mubr.f32.mxu0 0.0
    %317 = vmatmul.mubr.f32.gmra.mrb[0].mxu0 %v245
    %v318 = vpop.f32.mrb[0].mxu0
    %v319 = vadd.f32 %v238, %v318
    %v320 = vpop.f32.mrb[0].mxu0
    %321 = vdwg.mxu0
    %v322 = vtanh.pop %v314
    %v323 = vtanh.pop %v319
    %v324 = vld [vmem:[%s7] sm:$0xff]
    %v325 = vld [vmem:[%s7 + $0x8] sm:$0xff]
    %327 = vset.pattern.permute.xlu0 0
    %328 = vperm.xlu0 %327, %v324
    %v329 = vpop.permute.xlu0 %328
    %332 = vset.pattern.permute.xlu0 0
    %333 = vperm.xlu0 %332, %v325
    %v334 = vpop.permute.xlu0 %333
    %v336 = vmul.f32 %v329, %v322
    %v337 = vmul.f32 %v334, %v323
    %v338 = vadd.f32 %v336, %v337
    %v339 = vrot.slane %v338, 4
    %v340 = vadd.f32 %v338, %v339
    %v341 = vrot.slane %v340, 2
    %v342 = vadd.f32 %v340, %v341
    %v343 = vrot.slane %v342, 1
    %v344 = vadd.f32 %v342, %v343
    %v345 = vld [vmem:[#allocation2] sm:$0x1]
    %347 = vset.pattern.permute.xlu0 0
    %348 = vperm.xlu0 %347, %v345
    %v349 = vpop.permute.xlu0 %348
    %v351 = vlaneseq
    %v352 = vshrl.u32 %v351, 7
    %v353 = vsub.s32 0, %v352
    %v354 = vrot.slane %v349, %v353
    %v355 = vadd.f32 %v344, %v354
    %356 = vst [vmem:[#allocation3] sm:$0x1] %v355
    // Predicated region
    $region38: #{tpu_custom_call.1} parent=1 // pred_check
      _
    $region39: #{tpu_custom_call.1} parent=1 // pred_check_branch
      %358 = sbr.rel (0) target = $region41
    $region40: #{tpu_custom_call.1} parent=1 // pred_region
      %s360 = ssub.s32 16, 16
      %361 = vsyncadd [#allocation4], %s360
      %s363 = sshll.u32 [#allocation3], 4
      %s364 = int_to_ptr.vmem [resolvable:$true] %s363
      %366 = dma.vmem_to_hbm [thread:$0]  %s364, 16, %s9, [#allocation4]
    $region41: #{tpu_custom_call.1} parent=1 // pred_fallthru
      _
    // Predicated region
    $region42: #{tpu_custom_call.1} parent=1 // pred_check
      _
    $region43: #{tpu_custom_call.1} parent=1 // pred_check_branch
      %368 = sbr.rel (0) target = $region45
    $region44: #{tpu_custom_call.1} parent=1 // pred_region
      %369 = dma.done [#allocation4], 16
    $region45: #{tpu_custom_call.1} parent=1 // pred_fallthru
      _
    %370 = vsyncpa [#allocation4], 1

</llo_original>
